<compile_context>
chip_gen: v6e
topology: v6e:2x2x1
jax: 0.10.0
libtpu: 0.0.40
codegen_flags: <defaults>
</compile_context>

<pallas_src>
import functools
import math

import jax
import jax.numpy as jnp
from jax.experimental import pallas as pl
from jax.experimental.pallas import tpu as pltpu


def _round_up(v, m):
    return (v + m - 1) // m * m


def _softplus(x):
    # Numerically stable softplus: max(x, 0) + log1p(exp(-|x|)).
    return jnp.maximum(x, 0.0) + jnp.log1p(jnp.exp(-jnp.abs(x)))


def _st_net_kernel(x_ref, w1_ref, w2_ref, w3_ref, b12_ref, b3rs_ref,
                   s_ref, t_ref):
    dout_p = s_ref.shape[-1]

    x = x_ref[...]                                                    # (TB, Din)

    # Layer 1: relu(x @ W1 + b1)
    h1 = jnp.dot(x, w1_ref[...], preferred_element_type=jnp.float32)
    h1 = jnp.maximum(h1 + b12_ref[0:1, :], 0.0)

    # Layer 2: tanh(h1 @ W2 + b2)
    h2 = jnp.dot(h1, w2_ref[...], preferred_element_type=jnp.float32)
    h2 = jnp.tanh(h2 + b12_ref[1:2, :])

    # Layer 3: single 256-wide matmul for both halves, then split at the
    # 128-lane boundary (free vreg selection).
    y = jnp.dot(h2, w3_ref[...], preferred_element_type=jnp.float32)
    y = y + b3rs_ref[0:1, :]
    s_raw = y[:, :dout_p]
    t_raw = y[:, dout_p:]

    exp_rs = b3rs_ref[1:2, :dout_p]                                   # exp() precomputed
    s = _softplus(s_raw) * exp_rs

    s_ref[...] = s.astype(s_ref.dtype)
    t_ref[...] = t_raw.astype(t_ref.dtype)


def prepare_st_net_params(w1, b1, w2, b2, w3, b3, rescale_w):
    """One-time parameter padding/packing (run OUTSIDE the per-call hot path).

    w1: (Din, H), w2: (H, H), w3: (H, 2*Dout), b*: matching biases,
    rescale_w: (Dout,). Returns a dict of padded/packed arrays + `dout`.
    """
    f32 = jnp.float32
    Din, H = w1.shape
    Dout = w3.shape[1] // 2
    H_p = _round_up(H, 128)
    Dout_p = _round_up(Dout, 128)

    # Zero padding is semantics-preserving: padded W rows/cols contribute 0,
    # padded bias entries are 0, relu(0)=0, tanh(0)=0, and padded output
    # columns are sliced off in the wrapper.
    w1_p = jnp.zeros((Din, H_p), f32).at[:, :H].set(w1.astype(f32))
    w2_p = jnp.zeros((H_p, H_p), f32).at[:H, :H].set(w2.astype(f32))

    # Merged W3: scale half at lanes [0, Dout), translate half at [Dout_p, Dout_p+Dout).
    w3_p = jnp.zeros((H_p, 2 * Dout_p), f32)
    w3_p = w3_p.at[:H, :Dout].set(w3[:, :Dout].astype(f32))
    w3_p = w3_p.at[:H, Dout_p:Dout_p + Dout].set(w3[:, Dout:].astype(f32))

    # Packed biases: row 0 = b1, row 1 = b2.
    b12_p = jnp.zeros((2, H_p), f32).at[0, :H].set(b1.astype(f32)).at[1, :H].set(b2.astype(f32))

    # Packed b3 (both halves) + precomputed exp(rescale_w).
    b3rs_p = jnp.zeros((2, 2 * Dout_p), f32)
    b3rs_p = b3rs_p.at[0, :Dout].set(b3[:Dout].astype(f32))
    b3rs_p = b3rs_p.at[0, Dout_p:Dout_p + Dout].set(b3[Dout:].astype(f32))
    b3rs_p = b3rs_p.at[1, :Dout].set(jnp.exp(rescale_w.astype(f32)))

    return dict(w1_p=w1_p, w2_p=w2_p, w3_p=w3_p, b12_p=b12_p, b3rs_p=b3rs_p,
                dout=int(Dout))


@functools.partial(jax.jit, static_argnames=("dout", "row_tile"))
def st_net_softplus_forward(x, w1_p, w2_p, w3_p, b12_p, b3rs_p, *,
                            dout, row_tile=256):
    """Per-call forward. x: (B, Din) f32. Returns (s, t), each (B, dout)."""
    f32 = jnp.float32
    B, Din = x.shape
    H_p = w1_p.shape[1]
    Dout_p = w3_p.shape[1] // 2

    # Row tiling of the batch (sublane-aligned). For v7x pick row_tile so that
    # B_p // TB >= 2 and both TensorCores get a grid step; on single-TC
    # v5e/v6e prefer one big step (default 256).
    B8 = _round_up(B, 8)
    TB = min(_round_up(row_tile, 8), B8)
    B_p = _round_up(B8, TB)

    x = x.astype(f32)
    if B_p != B:
        x_p = jnp.zeros((B_p, Din), f32).at[:B, :].set(x)
    else:
        x_p = x

    grid = (B_p // TB,)
    full = lambda i: (0, 0)   # grid-invariant weights/biases: one resident block
    rows = lambda i: (i, 0)   # row-tiled arrays

    # Advisory cost estimate (actual K for layer 1, padded elsewhere).
    flops = 2 * B_p * (Din * H_p + H_p * H_p + H_p * 2 * Dout_p)
    transcendentals = B_p * (H_p + 2 * Dout_p)          # tanh + softplus exp
    bytes_accessed = 4 * (B_p * Din + Din * H_p + H_p * H_p + H_p * 2 * Dout_p
                          + 2 * H_p + 4 * Dout_p + 2 * B_p * Dout_p)

    # Explicit VMEM budget: resident weights + double-buffered x/output tiles,
    # with headroom (keeps realistic-H configs inside v7x's 64 MiB).
    weight_bytes = 4 * (Din * H_p + H_p * H_p + H_p * 2 * Dout_p + 2 * H_p + 4 * Dout_p)
    io_bytes = 4 * (TB * Din + 2 * TB * Dout_p)
    vmem_limit = int(min(2 * (weight_bytes + io_bytes) + (4 << 20), 96 << 20))

    s_pad, t_pad = pl.pallas_call(
        _st_net_kernel,
        out_shape=(
            jax.ShapeDtypeStruct((B_p, Dout_p), f32),
            jax.ShapeDtypeStruct((B_p, Dout_p), f32),
        ),
        grid_spec=pltpu.PrefetchScalarGridSpec(
            num_scalar_prefetch=0,
            grid=grid,
            in_specs=[
                pl.BlockSpec((TB, Din), rows),           # x row tile (no Din padding)
                pl.BlockSpec((Din, H_p), full),          # W1
                pl.BlockSpec((H_p, H_p), full),          # W2
                pl.BlockSpec((H_p, 2 * Dout_p), full),   # W3 (merged halves)
                pl.BlockSpec((2, H_p), full),            # b1 / b2 packed
                pl.BlockSpec((2, 2 * Dout_p), full),     # b3 packed + exp(rescale)
            ],
            out_specs=(
                pl.BlockSpec((TB, Dout_p), rows),        # s
                pl.BlockSpec((TB, Dout_p), rows),        # t
            ),
        ),
        compiler_params=pltpu.CompilerParams(
            dimension_semantics=("parallel",),
            vmem_limit_bytes=vmem_limit,
        ),
        cost_estimate=pl.CostEstimate(
            flops=int(flops),
            transcendentals=int(transcendentals),
            bytes_accessed=int(bytes_accessed),
        ),
    )(x_p, w1_p, w2_p, w3_p, b12_p, b3rs_p)

    return s_pad[:B, :dout], t_pad[:B, :dout]


def _reference(x, w1, b1, w2, b2, w3, b3, rescale_w):
    h1 = jnp.maximum(x @ w1 + b1, 0.0)
    h2 = jnp.tanh(h1 @ w2 + b2)
    y = h2 @ w3 + b3
    d = w3.shape[1] // 2
    s = _softplus(y[:, :d]) * jnp.exp(rescale_w)
    t = y[:, d:]
    return s, t


if __name__ == "__main__":
    # Small shapes consistent with the module: batch(*repeat)=8, input_dim=16,
    # hid_dim=64 (default), output_dim=8.
    B, Din, H, Dout = 8, 16, 64, 8

    key = jax.random.PRNGKey(0)
    k = jax.random.split(key, 8)

    x = jax.random.normal(k[0], (B, Din), dtype=jnp.float32)

    lim1 = math.sqrt(6.0 / (Din + H))      # xavier_uniform
    lim2 = math.sqrt(6.0 / (H + H))
    w1 = jax.random.uniform(k[1], (Din, H), jnp.float32, -lim1, lim1)
    b1 = 0.1 * jax.random.normal(k[2], (H,), dtype=jnp.float32)
    w2 = jax.random.uniform(k[3], (H, H), jnp.float32, -lim2, lim2)
    b2 = 0.1 * jax.random.normal(k[4], (H,), dtype=jnp.float32)
    # (module inits linear3 to 1e-10 / biases to 0; use small random values so
    #  the softplus / rescale / split paths are actually exercised)
    w3 = 0.1 * jax.random.normal(k[5], (H, 2 * Dout), dtype=jnp.float32)
    b3 = 0.1 * jax.random.normal(k[6], (2 * Dout,), dtype=jnp.float32)
    rescale_w = 0.1 * jax.random.normal(k[7], (Dout,), dtype=jnp.float32)

    # One-time parameter prep (outside the hot path).
    params = prepare_st_net_params(w1, b1, w2, b2, w3, b3, rescale_w)
    params = jax.block_until_ready(params)

    s, t = st_net_softplus_forward(
        x, params["w1_p"], params["w2_p"], params["w3_p"],
        params["b12_p"], params["b3rs_p"], dout=params["dout"])
    s, t = jax.block_until_ready((s, t))

    s_ref, t_ref = _reference(x, w1, b1, w2, b2, w3, b3, rescale_w)
    assert s.shape == (B, Dout) and t.shape == (B, Dout)
    assert jnp.allclose(s, s_ref, atol=1e-5, rtol=1e-5), "s mismatch vs reference"
    assert jnp.allclose(t, t_ref, atol=1e-5, rtol=1e-5), "t mismatch vs reference"

    print("KERNEL_OK")
</pallas_src>

<mosaic_0001>
module attributes {stable_mosaic.version = 11 : i64} {
  func.func @_st_net_kernel(%arg0: i32, %arg1: memref<8x16xf32, #tpu.memory_space<vmem>>, %arg2: memref<16x128xf32, #tpu.memory_space<vmem>>, %arg3: memref<128x128xf32, #tpu.memory_space<vmem>>, %arg4: memref<128x256xf32, #tpu.memory_space<vmem>>, %arg5: memref<2x128xf32, #tpu.memory_space<vmem>>, %arg6: memref<2x256xf32, #tpu.memory_space<vmem>>, %arg7: memref<8x128xf32, #tpu.memory_space<vmem>>, %arg8: memref<8x128xf32, #tpu.memory_space<vmem>>) attributes {dimension_semantics = [#tpu.dimension_semantics<parallel>], iteration_bounds = array<i64: 1>, scalar_prefetch = 0 : i64, scratch_operands = 0 : i64, tpu.core_type = #tpu.core_type<tc>, window_params = [{transform_indices = @transform_0, window_bounds = array<i64: 8, 16>}, {pipeline_mode = #tpu.pipeline_mode<synchronous>, transform_indices = @transform_1, window_bounds = array<i64: 16, 128>}, {pipeline_mode = #tpu.pipeline_mode<synchronous>, transform_indices = @transform_2, window_bounds = array<i64: 128, 128>}, {pipeline_mode = #tpu.pipeline_mode<synchronous>, transform_indices = @transform_3, window_bounds = array<i64: 128, 256>}, {pipeline_mode = #tpu.pipeline_mode<synchronous>, transform_indices = @transform_4, window_bounds = array<i64: 2, 128>}, {pipeline_mode = #tpu.pipeline_mode<synchronous>, transform_indices = @transform_5, window_bounds = array<i64: 2, 256>}, {transform_indices = @transform_6, window_bounds = array<i64: 8, 128>}, {transform_indices = @transform_7, window_bounds = array<i64: 8, 128>}]} {
    %c0 = arith.constant 0 : index
    %c0_0 = arith.constant 0 : index
    %0 = vector.load %arg1[%c0, %c0_0] : memref<8x16xf32, #tpu.memory_space<vmem>>, vector<8x16xf32>
    %c0_1 = arith.constant 0 : index
    %c0_2 = arith.constant 0 : index
    %1 = vector.load %arg2[%c0_1, %c0_2] : memref<16x128xf32, #tpu.memory_space<vmem>>, vector<16x128xf32>
    %cst = arith.constant dense<0.000000e+00> : vector<8x128xf32>
    %2 = tpu.matmul %0, %1, %cst {dimension_numbers = #tpu.dot_dimension_numbers<[1], [0], [0], [1], [0, 0, 1, 1], [], []>} : vector<8x16xf32>, vector<16x128xf32>, vector<8x128xf32> -> vector<8x128xf32>
    %c0_3 = arith.constant 0 : index
    %c0_4 = arith.constant 0 : index
    %3 = vector.load %arg5[%c0_3, %c0_4] : memref<2x128xf32, #tpu.memory_space<vmem>>, vector<1x128xf32>
    %4 = vector.broadcast %3 : vector<1x128xf32> to vector<8x128xf32>
    %5 = arith.addf %2, %4 : vector<8x128xf32>
    %cst_5 = arith.constant 0.000000e+00 : f32
    %6 = vector.broadcast %cst_5 : f32 to vector<8x128xf32>
    %7 = arith.maximumf %5, %6 : vector<8x128xf32>
    %c0_6 = arith.constant 0 : index
    %c0_7 = arith.constant 0 : index
    %8 = vector.load %arg3[%c0_6, %c0_7] : memref<128x128xf32, #tpu.memory_space<vmem>>, vector<128x128xf32>
    %cst_8 = arith.constant dense<0.000000e+00> : vector<8x128xf32>
    %9 = tpu.matmul %7, %8, %cst_8 {dimension_numbers = #tpu.dot_dimension_numbers<[1], [0], [0], [1], [0, 0, 1, 1], [], []>} : vector<8x128xf32>, vector<128x128xf32>, vector<8x128xf32> -> vector<8x128xf32>
    %c1 = arith.constant 1 : index
    %c0_9 = arith.constant 0 : index
    %10 = vector.load %arg5[%c1, %c0_9] : memref<2x128xf32, #tpu.memory_space<vmem>>, vector<1x128xf32>
    %11 = vector.broadcast %10 : vector<1x128xf32> to vector<8x128xf32>
    %12 = arith.addf %9, %11 : vector<8x128xf32>
    %13 = math.tanh %12 : vector<8x128xf32>
    %c0_10 = arith.constant 0 : index
    %c0_11 = arith.constant 0 : index
    %14 = vector.load %arg4[%c0_10, %c0_11] : memref<128x256xf32, #tpu.memory_space<vmem>>, vector<128x256xf32>
    %cst_12 = arith.constant dense<0.000000e+00> : vector<8x256xf32>
    %15 = tpu.matmul %13, %14, %cst_12 {dimension_numbers = #tpu.dot_dimension_numbers<[1], [0], [0], [1], [0, 0, 1, 1], [], []>} : vector<8x128xf32>, vector<128x256xf32>, vector<8x256xf32> -> vector<8x256xf32>
    %c0_13 = arith.constant 0 : index
    %c0_14 = arith.constant 0 : index
    %16 = vector.load %arg6[%c0_13, %c0_14] : memref<2x256xf32, #tpu.memory_space<vmem>>, vector<1x256xf32>
    %17 = vector.broadcast %16 : vector<1x256xf32> to vector<8x256xf32>
    %18 = arith.addf %15, %17 : vector<8x256xf32>
    %19 = vector.extract_strided_slice %18 {offsets = [0, 0], sizes = [8, 128], strides = [1, 1]} : vector<8x256xf32> to vector<8x128xf32>
    %20 = vector.extract_strided_slice %18 {offsets = [0, 128], sizes = [8, 128], strides = [1, 1]} : vector<8x256xf32> to vector<8x128xf32>
    %c1_15 = arith.constant 1 : index
    %c0_16 = arith.constant 0 : index
    %21 = vector.load %arg6[%c1_15, %c0_16] : memref<2x256xf32, #tpu.memory_space<vmem>>, vector<1x128xf32>
    %cst_17 = arith.constant 0.000000e+00 : f32
    %22 = vector.broadcast %cst_17 : f32 to vector<8x128xf32>
    %23 = arith.maximumf %19, %22 : vector<8x128xf32>
    %24 = math.absf %19 : vector<8x128xf32>
    %cst_18 = arith.constant 0.000000e+00 : f32
    %25 = vector.broadcast %cst_18 : f32 to vector<8x128xf32>
    %26 = arith.subf %25, %24 : vector<8x128xf32>
    %27 = math.exp %26 : vector<8x128xf32>
    %28 = math.log1p %27 : vector<8x128xf32>
    %29 = arith.addf %23, %28 : vector<8x128xf32>
    %30 = vector.broadcast %21 : vector<1x128xf32> to vector<8x128xf32>
    %31 = arith.mulf %29, %30 : vector<8x128xf32>
    %c0_19 = arith.constant 0 : index
    %c0_20 = arith.constant 0 : index
    %32 = vector.load %arg7[%c0_19, %c0_20] : memref<8x128xf32, #tpu.memory_space<vmem>>, vector<8x128xf32>
    tpu.vector_store %arg7[%c0_19, %c0_20], %31 {strides = array<i32>} : memref<8x128xf32, #tpu.memory_space<vmem>>, vector<8x128xf32>,
    %c0_21 = arith.constant 0 : index
    %c0_22 = arith.constant 0 : index
    %33 = vector.load %arg8[%c0_21, %c0_22] : memref<8x128xf32, #tpu.memory_space<vmem>>, vector<8x128xf32>
    tpu.vector_store %arg8[%c0_21, %c0_22], %20 {strides = array<i32>} : memref<8x128xf32, #tpu.memory_space<vmem>>, vector<8x128xf32>,
    return
  }
  func.func @transform_0(%arg0: i32) -> (i32, i32) {
    %c0_i32 = arith.constant 0 : i32
    %c0_i32_0 = arith.constant 0 : i32
    return %arg0, %c0_i32 : i32, i32
  }
  func.func @transform_1(%arg0: i32) -> (i32, i32) {
    %c0_i32 = arith.constant 0 : i32
    %c0_i32_0 = arith.constant 0 : i32
    %c0_i32_1 = arith.constant 0 : i32
    return %c0_i32, %c0_i32_0 : i32, i32
  }
  func.func @transform_2(%arg0: i32) -> (i32, i32) {
    %c0_i32 = arith.constant 0 : i32
    %c0_i32_0 = arith.constant 0 : i32
    %c0_i32_1 = arith.constant 0 : i32
    return %c0_i32, %c0_i32_0 : i32, i32
  }
  func.func @transform_3(%arg0: i32) -> (i32, i32) {
    %c0_i32 = arith.constant 0 : i32
    %c0_i32_0 = arith.constant 0 : i32
    %c0_i32_1 = arith.constant 0 : i32
    return %c0_i32, %c0_i32_0 : i32, i32
  }
  func.func @transform_4(%arg0: i32) -> (i32, i32) {
    %c0_i32 = arith.constant 0 : i32
    %c0_i32_0 = arith.constant 0 : i32
    %c0_i32_1 = arith.constant 0 : i32
    return %c0_i32, %c0_i32_0 : i32, i32
  }
  func.func @transform_5(%arg0: i32) -> (i32, i32) {
    %c0_i32 = arith.constant 0 : i32
    %c0_i32_0 = arith.constant 0 : i32
    %c0_i32_1 = arith.constant 0 : i32
    return %c0_i32, %c0_i32_0 : i32, i32
  }
  func.func @transform_6(%arg0: i32) -> (i32, i32) {
    %c0_i32 = arith.constant 0 : i32
    %c0_i32_0 = arith.constant 0 : i32
    return %arg0, %c0_i32 : i32, i32
  }
  func.func @transform_7(%arg0: i32) -> (i32, i32) {
    %c0_i32 = arith.constant 0 : i32
    %c0_i32_0 = arith.constant 0 : i32
    return %arg0, %c0_i32 : i32, i32
  }
}

</mosaic_0001>

<llo_original>
// kernel: st_net_softplus_forward.1
$region0: #{st_net_softplus_forward.1}
  #allocation0 [shape = 'u32[]', space=smem, size = 0x4, offset = 0x4, fixed_abs, tag = 'smem constant byte address 0x4 - core index']
  #allocation1 [shape = 'u32[144,128]{1,0:T(1,128)}', space=vmem, size = 0x12000, scoped, tag = 'internal scratch']
  %s0 = inlined_call_operand.hbm [shape: f32[8,16], index: 0, kind: input, shape index: {}]
  %s1 = inlined_call_operand.hbm [shape: f32[16,128], index: 1, kind: input, shape index: {}]
  %s2 = inlined_call_operand.hbm [shape: f32[128,128], index: 2, kind: input, shape index: {}]
  %s3 = inlined_call_operand.hbm [shape: f32[128,256], index: 3, kind: input, shape index: {}]
  %s4 = inlined_call_operand.vmem [shape: f32[2,128], index: 4, kind: input, shape index: {}]
  %s5 = inlined_call_operand.vmem [shape: f32[2,256], index: 5, kind: input, shape index: {}]
  %s6 = inlined_call_operand.hbm [shape: f32[8,128], index: 6, kind: output, shape index: {0}]
  %s7 = inlined_call_operand.hbm [shape: f32[8,128], index: 7, kind: output, shape index: {1}]
  %8 = xla_tuple %s6, %s7
  %s9 = sld [smem:[#allocation0]]
  $region58: #{st_net_softplus_forward.1} parent=0
    _
  %s11 = ssub.s32 1, %s9
  %s12 = scalar_select 0, %s11, %s9
  $region1: #{st_net_softplus_forward.1} parent=0
    #allocation2 [shape = 'u8[4096]{0}', space=vmem, size = 0x1000, scoped, tag = 'input window, operand 0, single buffered']
    #allocation3 [shape = 's32[1]{0}', space=sflag, size = 0x4, scoped, tag = 'scoped memory for st_net_softplus_forward.1']
    #allocation4 [shape = 's32[1]{0}', space=sflag, size = 0x4, scoped, tag = 'scoped memory for st_net_softplus_forward.1']
    #allocation5 [shape = 'u8[8192]{0}', space=vmem, size = 0x2000, scoped, tag = 'input window, operand 1, single buffered']
    #allocation6 [shape = 's32[1]{0}', space=sflag, size = 0x4, scoped, tag = 'scoped memory for st_net_softplus_forward.1']
    #allocation7 [shape = 'u8[65536]{0}', space=vmem, size = 0x10000, scoped, tag = 'input window, operand 2, single buffered']
    #allocation8 [shape = 'u8[131072]{0}', space=vmem, size = 0x20000, scoped, tag = 'input window, operand 3, single buffered']
    #allocation9 [shape = 's32[1]{0}', space=sflag, size = 0x4, scoped, tag = 'scoped memory for st_net_softplus_forward.1']
    #allocation10 [shape = 'u8[4096]{0}', space=vmem, size = 0x1000, scoped, tag = 'output window, operand 0, single buffered']
    #allocation11 [shape = 'u8[4096]{0}', space=vmem, size = 0x1000, scoped, tag = 'output window, operand 1, single buffered']
    #allocation12 [shape = 's32[1]{0}', space=sflag, size = 0x4, scoped, tag = 'scoped memory for st_net_softplus_forward.1']
    %13 = vsyncpa [#allocation3], 0
    %14 = vsyncpa [#allocation6], 0
    %15 = vsyncpa [#allocation9], 0
    %16 = vsyncpa [#allocation4], 0
    %17 = vsyncpa [#allocation12], 0
    // Predicated region
    $region2: #{st_net_softplus_forward.1} parent=1 // pred_check
      _
    $region3: #{st_net_softplus_forward.1} parent=1 // pred_check_branch
      %19 = sbr.rel (0) target = $region5
    $region4: #{st_net_softplus_forward.1} parent=1 // pred_region
      %s21 = ssub.s32 128, 128
      %22 = vsyncadd [#allocation3], %s21
      %s24 = sshll.u32 [#allocation2], 4
      %s25 = int_to_ptr.vmem [resolvable:$true] %s24
      %27 = dma.hbm_to_vmem [thread:$0]  %s0, 128, %s25, [#allocation3]
    $region5: #{st_net_softplus_forward.1} parent=1 // pred_fallthru
      _
    // Predicated region
    $region6: #{st_net_softplus_forward.1} parent=1 // pred_check
      _
    $region7: #{st_net_softplus_forward.1} parent=1 // pred_check_branch
      %29 = sbr.rel (0) target = $region9
    $region8: #{st_net_softplus_forward.1} parent=1 // pred_region
      %s31 = ssub.s32 256, 256
      %32 = vsyncadd [#allocation6], %s31
      %s33 = sshll.u32 [#allocation5], 4
      %s34 = int_to_ptr.vmem [resolvable:$true] %s33
      %39 = dma.hbm_to_vmem [thread:$0]  %s1, 256, %s34, [#allocation6], 128, 128, 8
    $region9: #{st_net_softplus_forward.1} parent=1 // pred_fallthru
      _
    // Predicated region
    $region10: #{st_net_softplus_forward.1} parent=1 // pred_check
      _
    $region11: #{st_net_softplus_forward.1} parent=1 // pred_check_branch
      %41 = sbr.rel (0) target = $region13
    $region12: #{st_net_softplus_forward.1} parent=1 // pred_region
      %s43 = ssub.s32 2048, 2048
      %44 = vsyncadd [#allocation6], %s43
      %s45 = sshll.u32 [#allocation7], 4
      %s46 = int_to_ptr.vmem [resolvable:$true] %s45
      %51 = dma.hbm_to_vmem [thread:$0]  %s2, 2048, %s46, [#allocation6], 128, 128, 8
    $region13: #{st_net_softplus_forward.1} parent=1 // pred_fallthru
      _
    // Predicated region
    $region14: #{st_net_softplus_forward.1} parent=1 // pred_check
      _
    $region15: #{st_net_softplus_forward.1} parent=1 // pred_check_branch
      %53 = sbr.rel (0) target = $region17
    $region16: #{st_net_softplus_forward.1} parent=1 // pred_region
      %s55 = ssub.s32 4096, 4096
      %56 = vsyncadd [#allocation9], %s55
      %s57 = sshll.u32 [#allocation8], 4
      %s58 = int_to_ptr.vmem [resolvable:$true] %s57
      %63 = dma.hbm_to_vmem [thread:$0]  %s3, 4096, %s58, [#allocation9], 256, 256, 16
    $region17: #{st_net_softplus_forward.1} parent=1 // pred_fallthru
      _
    // Predicated region
    $region18: #{st_net_softplus_forward.1} parent=1 // pred_check
      _
    $region19: #{st_net_softplus_forward.1} parent=1 // pred_check_branch
      %65 = sbr.rel (0) target = $region21
    $region20: #{st_net_softplus_forward.1} parent=1 // pred_region
      _
    $region21: #{st_net_softplus_forward.1} parent=1 // pred_fallthru
      _
    // Predicated region
    $region22: #{st_net_softplus_forward.1} parent=1 // pred_check
      _
    $region23: #{st_net_softplus_forward.1} parent=1 // pred_check_branch
      %67 = sbr.rel (0) target = $region25
    $region24: #{st_net_softplus_forward.1} parent=1 // pred_region
      _
    $region25: #{st_net_softplus_forward.1} parent=1 // pred_fallthru
      _
    // Predicated region
    $region26: #{st_net_softplus_forward.1} parent=1 // pred_check
      _
    $region27: #{st_net_softplus_forward.1} parent=1 // pred_check_branch
      %69 = sbr.rel (0) target = $region29
    $region28: #{st_net_softplus_forward.1} parent=1 // pred_region
      %70 = dma.done [#allocation3], 128
    $region29: #{st_net_softplus_forward.1} parent=1 // pred_fallthru
      _
    // Predicated region
    $region30: #{st_net_softplus_forward.1} parent=1 // pred_check
      _
    $region31: #{st_net_softplus_forward.1} parent=1 // pred_check_branch
      %72 = sbr.rel (0) target = $region33
    $region32: #{st_net_softplus_forward.1} parent=1 // pred_region
      %73 = dma.done [#allocation6], 256
    $region33: #{st_net_softplus_forward.1} parent=1 // pred_fallthru
      _
    // Predicated region
    $region34: #{st_net_softplus_forward.1} parent=1 // pred_check
      _
    $region35: #{st_net_softplus_forward.1} parent=1 // pred_check_branch
      %75 = sbr.rel (0) target = $region37
    $region36: #{st_net_softplus_forward.1} parent=1 // pred_region
      %76 = dma.done [#allocation6], 2048
    $region37: #{st_net_softplus_forward.1} parent=1 // pred_fallthru
      _
    // Predicated region
    $region38: #{st_net_softplus_forward.1} parent=1 // pred_check
      _
    $region39: #{st_net_softplus_forward.1} parent=1 // pred_check_branch
      %78 = sbr.rel (0) target = $region41
    $region40: #{st_net_softplus_forward.1} parent=1 // pred_region
      %79 = dma.done [#allocation9], 4096
    $region41: #{st_net_softplus_forward.1} parent=1 // pred_fallthru
      _
    %v80 = vld [vmem:[#allocation2] sm:$0xff]
    %v81 = vld [vmem:[#allocation5] sm:$0xff]
    %v82 = vld [vmem:[#allocation5 + $0x8] sm:$0xff]
    %v83 = vld [vmem:[%s4] sm:$0x1]
    %v84 = vlaneseq
    %v85 = vshrl.u32 %v84, 7
    %v86 = vsub.s32 0, %v85
    %v87 = vrot.slane %v83, %v86
    %vm88 = vcmask 130048
    %v90 = vsel %vm88, %v80, 0
    %92 = vmatprep.subr.mxu0 0.0
    %93 = vmatpush1.msra.mxu0 0.0
    %94 = vmatprep.subr.mxu0 0.0
    %95 = vmatpush1.msra.mxu0 0.0
    %96 = vmatprep.subr.mxu0 0.0
    %97 = vmatpush1.msra.mxu0 0.0
    %98 = vmatprep.subr.mxu0 0.0
    %99 = vmatpush1.msra.mxu0 0.0
    %100 = vmatprep.subr.mxu0 0.0
    %101 = vmatpush1.msra.mxu0 0.0
    %102 = vmatprep.subr.mxu0 0.0
    %103 = vmatpush1.msra.mxu0 0.0
    %104 = vmatprep.subr.mxu0 0.0
    %105 = vmatpush1.msra.mxu0 0.0
    %106 = vmatprep.subr.mxu0 0.0
    %107 = vmatpush1.msra.mxu0 0.0
    %108 = vmatprep.subr.mxu0 0.0
    %109 = vmatpush1.msra.mxu0 0.0
    %110 = vmatprep.subr.mxu0 0.0
    %111 = vmatpush1.msra.mxu0 0.0
    %112 = vmatprep.subr.mxu0 0.0
    %113 = vmatpush1.msra.mxu0 0.0
    %114 = vmatprep.subr.mxu0 0.0
    %115 = vmatpush1.msra.mxu0 0.0
    %116 = vmatprep.subr.mxu0 0.0
    %117 = vmatpush1.msra.mxu0 0.0
    %118 = vmatprep.subr.mxu0 0.0
    %119 = vmatpush1.msra.mxu0 0.0
    %120 = vmatprep.subr.mxu0 0.0
    %121 = vmatpush1.msra.mxu0 %v82
    %122 = vmatprep.subr.mxu0 0.0
    %123 = vmatpush1.msra.mxu0 %v81
    %124 = vmatprep.subr.mxu0 0.0
    %125 = vmatpush2.msra.mxu0 0.0
    %126 = vmatprep.subr.mxu0 0.0
    %127 = vmatpush2.msra.mxu0 0.0
    %128 = vmatprep.subr.mxu0 0.0
    %129 = vmatpush2.msra.mxu0 0.0
    %130 = vmatprep.subr.mxu0 0.0
    %131 = vmatpush2.msra.mxu0 0.0
    %132 = vmatprep.subr.mxu0 0.0
    %133 = vmatpush2.msra.mxu0 0.0
    %134 = vmatprep.subr.mxu0 0.0
    %135 = vmatpush2.msra.mxu0 0.0
    %136 = vmatprep.subr.mxu0 0.0
    %137 = vmatpush2.msra.mxu0 0.0
    %138 = vmatprep.subr.mxu0 0.0
    %139 = vmatpush2.msra.mxu0 0.0
    %140 = vmatprep.subr.mxu0 0.0
    %141 = vmatpush2.msra.mxu0 0.0
    %142 = vmatprep.subr.mxu0 0.0
    %143 = vmatpush2.msra.mxu0 0.0
    %144 = vmatprep.subr.mxu0 0.0
    %145 = vmatpush2.msra.mxu0 0.0
    %146 = vmatprep.subr.mxu0 0.0
    %147 = vmatpush2.msra.mxu0 0.0
    %148 = vmatprep.subr.mxu0 0.0
    %149 = vmatpush2.msra.mxu0 0.0
    %150 = vmatprep.subr.mxu0 0.0
    %151 = vmatpush2.msra.mxu0 0.0
    %152 = vmatprep.subr.mxu0 0.0
    %153 = vmatpush2.msra.mxu0 0.0
    %154 = vmatprep.subr.mxu0 0.0
    %155 = vmatpush2.msra.mxu0 0.0
    %156 = vmatprep.mubr.f32.mxu0 0.0
    %157 = vmatmul.mubr.f32.gmra.mxu0 %v90
    %v158 = vpop.f32.mrf.mxu0
    %v159 = vadd.f32 %v87, %v158
    %v160 = vpop.f32.mrf.mxu0
    %161 = vdwg.mxu0
    %v162 = vmax.f32 %v159, 0.0
    %v163 = vld [vmem:[#allocation7] sm:$0xff]
    %v164 = vld [vmem:[#allocation7 + $0x8] sm:$0xff]
    %v165 = vld [vmem:[#allocation7 + $0x10] sm:$0xff]
    %v166 = vld [vmem:[#allocation7 + $0x18] sm:$0xff]
    %v167 = vld [vmem:[#allocation7 + $0x20] sm:$0xff]
    %v168 = vld [vmem:[#allocation7 + $0x28] sm:$0xff]
    %v169 = vld [vmem:[#allocation7 + $0x30] sm:$0xff]
    %v170 = vld [vmem:[#allocation7 + $0x38] sm:$0xff]
    %v171 = vld [vmem:[#allocation7 + $0x40] sm:$0xff]
    %v172 = vld [vmem:[#allocation7 + $0x48] sm:$0xff]
    %v173 = vld [vmem:[#allocation7 + $0x50] sm:$0xff]
    %v174 = vld [vmem:[#allocation7 + $0x58] sm:$0xff]
    %v175 = vld [vmem:[#allocation7 + $0x60] sm:$0xff]
    %v176 = vld [vmem:[#allocation7 + $0x68] sm:$0xff]
    %v177 = vld [vmem:[#allocation7 + $0x70] sm:$0xff]
    %v178 = vld [vmem:[#allocation7 + $0x78] sm:$0xff]
    %v179 = vld [vmem:[%s4 + $0x1] sm:$0x1]
    %v180 = vlaneseq
    %v181 = vshrl.u32 %v180, 7
    %v182 = vsub.s32 0, %v181
    %v183 = vrot.slane %v179, %v182
    %184 = vmatprep.subr.mxu0 0.0
    %185 = vmatpush1.msra.mxu0 %v178
    %186 = vmatprep.subr.mxu0 0.0
    %187 = vmatpush1.msra.mxu0 %v177
    %188 = vmatprep.subr.mxu0 0.0
    %189 = vmatpush1.msra.mxu0 %v176
    %190 = vmatprep.subr.mxu0 0.0
    %191 = vmatpush1.msra.mxu0 %v175
    %192 = vmatprep.subr.mxu0 0.0
    %193 = vmatpush1.msra.mxu0 %v174
    %194 = vmatprep.subr.mxu0 0.0
    %195 = vmatpush1.msra.mxu0 %v173
    %196 = vmatprep.subr.mxu0 0.0
    %197 = vmatpush1.msra.mxu0 %v172
    %198 = vmatprep.subr.mxu0 0.0
    %199 = vmatpush1.msra.mxu0 %v171
    %200 = vmatprep.subr.mxu0 0.0
    %201 = vmatpush1.msra.mxu0 %v170
    %202 = vmatprep.subr.mxu0 0.0
    %203 = vmatpush1.msra.mxu0 %v169
    %204 = vmatprep.subr.mxu0 0.0
    %205 = vmatpush1.msra.mxu0 %v168
    %206 = vmatprep.subr.mxu0 0.0
    %207 = vmatpush1.msra.mxu0 %v167
    %208 = vmatprep.subr.mxu0 0.0
    %209 = vmatpush1.msra.mxu0 %v166
    %210 = vmatprep.subr.mxu0 0.0
    %211 = vmatpush1.msra.mxu0 %v165
    %212 = vmatprep.subr.mxu0 0.0
    %213 = vmatpush1.msra.mxu0 %v164
    %214 = vmatprep.subr.mxu0 0.0
    %215 = vmatpush1.msra.mxu0 %v163
    %216 = vmatprep.subr.mxu0 0.0
    %217 = vmatpush2.msra.mxu0 0.0
    %218 = vmatprep.subr.mxu0 0.0
    %219 = vmatpush2.msra.mxu0 0.0
    %220 = vmatprep.subr.mxu0 0.0
    %221 = vmatpush2.msra.mxu0 0.0
    %222 = vmatprep.subr.mxu0 0.0
    %223 = vmatpush2.msra.mxu0 0.0
    %224 = vmatprep.subr.mxu0 0.0
    %225 = vmatpush2.msra.mxu0 0.0
    %226 = vmatprep.subr.mxu0 0.0
    %227 = vmatpush2.msra.mxu0 0.0
    %228 = vmatprep.subr.mxu0 0.0
    %229 = vmatpush2.msra.mxu0 0.0
    %230 = vmatprep.subr.mxu0 0.0
    %231 = vmatpush2.msra.mxu0 0.0
    %232 = vmatprep.subr.mxu0 0.0
    %233 = vmatpush2.msra.mxu0 0.0
    %234 = vmatprep.subr.mxu0 0.0
    %235 = vmatpush2.msra.mxu0 0.0
    %236 = vmatprep.subr.mxu0 0.0
    %237 = vmatpush2.msra.mxu0 0.0
    %238 = vmatprep.subr.mxu0 0.0
    %239 = vmatpush2.msra.mxu0 0.0
    %240 = vmatprep.subr.mxu0 0.0
    %241 = vmatpush2.msra.mxu0 0.0
    %242 = vmatprep.subr.mxu0 0.0
    %243 = vmatpush2.msra.mxu0 0.0
    %244 = vmatprep.subr.mxu0 0.0
    %245 = vmatpush2.msra.mxu0 0.0
    %246 = vmatprep.subr.mxu0 0.0
    %247 = vmatpush2.msra.mxu0 0.0
    %248 = vmatprep.mubr.f32.mxu0 0.0
    %249 = vmatmul.mubr.f32.gmra.mxu0 %v162
    %v250 = vpop.f32.mrf.mxu0
    %v251 = vadd.f32 %v183, %v250
    %v252 = vpop.f32.mrf.mxu0
    %253 = vdwg.mxu0
    %v254 = vtanh.pop %v251
    %v255 = vld [vmem:[#allocation8] sm:$0xff]
    %v256 = vld [vmem:[#allocation8 + $0x8] sm:$0xff]
    %v257 = vld [vmem:[#allocation8 + $0x10] sm:$0xff]
    %v258 = vld [vmem:[#allocation8 + $0x18] sm:$0xff]
    %v259 = vld [vmem:[#allocation8 + $0x20] sm:$0xff]
    %v260 = vld [vmem:[#allocation8 + $0x28] sm:$0xff]
    %v261 = vld [vmem:[#allocation8 + $0x30] sm:$0xff]
    %v262 = vld [vmem:[#allocation8 + $0x38] sm:$0xff]
    %v263 = vld [vmem:[#allocation8 + $0x40] sm:$0xff]
    %v264 = vld [vmem:[#allocation8 + $0x48] sm:$0xff]
    %v265 = vld [vmem:[#allocation8 + $0x50] sm:$0xff]
    %v266 = vld [vmem:[#allocation8 + $0x58] sm:$0xff]
    %v267 = vld [vmem:[#allocation8 + $0x60] sm:$0xff]
    %v268 = vld [vmem:[#allocation8 + $0x68] sm:$0xff]
    %v269 = vld [vmem:[#allocation8 + $0x70] sm:$0xff]
    %v270 = vld [vmem:[#allocation8 + $0x78] sm:$0xff]
    %v271 = vld [vmem:[#allocation8 + $0x80] sm:$0xff]
    %v272 = vld [vmem:[#allocation8 + $0x88] sm:$0xff]
    %v273 = vld [vmem:[#allocation8 + $0x90] sm:$0xff]
    %v274 = vld [vmem:[#allocation8 + $0x98] sm:$0xff]
    %v275 = vld [vmem:[#allocation8 + $0xa0] sm:$0xff]
    %v276 = vld [vmem:[#allocation8 + $0xa8] sm:$0xff]
    %v277 = vld [vmem:[#allocation8 + $0xb0] sm:$0xff]
    %v278 = vld [vmem:[#allocation8 + $0xb8] sm:$0xff]
    %v279 = vld [vmem:[#allocation8 + $0xc0] sm:$0xff]
    %v280 = vld [vmem:[#allocation8 + $0xc8] sm:$0xff]
    %v281 = vld [vmem:[#allocation8 + $0xd0] sm:$0xff]
    %v282 = vld [vmem:[#allocation8 + $0xd8] sm:$0xff]
    %v283 = vld [vmem:[#allocation8 + $0xe0] sm:$0xff]
    %v284 = vld [vmem:[#allocation8 + $0xe8] sm:$0xff]
    %v285 = vld [vmem:[#allocation8 + $0xf0] sm:$0xff]
    %v286 = vld [vmem:[#allocation8 + $0xf8] sm:$0xff]
    %v287 = vld [vmem:[%s5] ss:$2 sm:$0x3]
    %v289 = vlaneseq
    %v290 = vshrl.u32 %v289, 7
    %v291 = vsub.s32 0, %v290
    %v292 = vrot.slane %v287, %v291
    %v293 = vlaneseq
    %v294 = vshrl.u32 %v293, 7
    %v295 = vsub.s32 1, %v294
    %v296 = vrot.slane %v287, %v295
    %299 = vmatprep.subr.mxu0 %v286
    %300 = vmatpush1.msra.mxu0 %v285
    %301 = vmatprep.subr.mxu0 %v284
    %302 = vmatpush1.msra.mxu0 %v283
    %303 = vmatprep.subr.mxu0 %v282
    %304 = vmatpush1.msra.mxu0 %v281
    %305 = vmatprep.subr.mxu0 %v280
    %306 = vmatpush1.msra.mxu0 %v279
    %307 = vmatprep.subr.mxu0 %v278
    %308 = vmatpush1.msra.mxu0 %v277
    %309 = vmatprep.subr.mxu0 %v276
    %310 = vmatpush1.msra.mxu0 %v275
    %311 = vmatprep.subr.mxu0 %v274
    %312 = vmatpush1.msra.mxu0 %v273
    %313 = vmatprep.subr.mxu0 %v272
    %314 = vmatpush1.msra.mxu0 %v271
    %315 = vmatprep.subr.mxu0 %v270
    %316 = vmatpush1.msra.mxu0 %v269
    %317 = vmatprep.subr.mxu0 %v268
    %318 = vmatpush1.msra.mxu0 %v267
    %319 = vmatprep.subr.mxu0 %v266
    %320 = vmatpush1.msra.mxu0 %v265
    %321 = vmatprep.subr.mxu0 %v264
    %322 = vmatpush1.msra.mxu0 %v263
    %323 = vmatprep.subr.mxu0 %v262
    %324 = vmatpush1.msra.mxu0 %v261
    %325 = vmatprep.subr.mxu0 %v260
    %326 = vmatpush1.msra.mxu0 %v259
    %327 = vmatprep.subr.mxu0 %v258
    %328 = vmatpush1.msra.mxu0 %v257
    %329 = vmatprep.subr.mxu0 %v256
    %330 = vmatpush1.msra.mxu0 %v255
    %331 = vmatprep.subr.mxu0 0.0
    %332 = vmatpush2.msra.mxu0 0.0
    %333 = vmatprep.subr.mxu0 0.0
    %334 = vmatpush2.msra.mxu0 0.0
    %335 = vmatprep.subr.mxu0 0.0
    %336 = vmatpush2.msra.mxu0 0.0
    %337 = vmatprep.subr.mxu0 0.0
    %338 = vmatpush2.msra.mxu0 0.0
    %339 = vmatprep.subr.mxu0 0.0
    %340 = vmatpush2.msra.mxu0 0.0
    %341 = vmatprep.subr.mxu0 0.0
    %342 = vmatpush2.msra.mxu0 0.0
    %343 = vmatprep.subr.mxu0 0.0
    %344 = vmatpush2.msra.mxu0 0.0
    %345 = vmatprep.subr.mxu0 0.0
    %346 = vmatpush2.msra.mxu0 0.0
    %347 = vmatprep.subr.mxu0 0.0
    %348 = vmatpush2.msra.mxu0 0.0
    %349 = vmatprep.subr.mxu0 0.0
    %350 = vmatpush2.msra.mxu0 0.0
    %351 = vmatprep.subr.mxu0 0.0
    %352 = vmatpush2.msra.mxu0 0.0
    %353 = vmatprep.subr.mxu0 0.0
    %354 = vmatpush2.msra.mxu0 0.0
    %355 = vmatprep.subr.mxu0 0.0
    %356 = vmatpush2.msra.mxu0 0.0
    %357 = vmatprep.subr.mxu0 0.0
    %358 = vmatpush2.msra.mxu0 0.0
    %359 = vmatprep.subr.mxu0 0.0
    %360 = vmatpush2.msra.mxu0 0.0
    %361 = vmatprep.subr.mxu0 0.0
    %362 = vmatpush2.msra.mxu0 0.0
    %363 = vmatprep.mubr.f32.mxu0 0.0
    %364 = vmatmul.mubr.f32.gmra.mxu0 %v254
    %v365 = vpop.f32.mrf.mxu0
    %v366 = vadd.f32 %v292, %v365
    %v367 = vpop.f32.mrf.mxu0
    %v368 = vadd.f32 %v296, %v367
    %369 = vdwg.mxu0
    %v370 = vld [vmem:[%s5 + $0x1] sm:$0x1]
    %v371 = vmax.f32 %v366, 0.0
    %v372 = vand.u32 2147483647, %v366
    %v373 = vsub.f32 0.0, %v372
    %v374 = vmul.f32 %v373, 1.442695
    %v375 = vpow.pop %v374
    %v376 = vadd.f32 %v375, 1.0
    %v377 = vlog2.pop %v376
    %v378 = vmul.f32 %v377, 0.6931472
    %v379 = vmul.f32 -0.5, %v375
    %v380 = vadd.f32 %v379, 1.0
    %v381 = vmul.f32 %v380, %v375
    %v382 = vand.u32 2147483647, %v375
    %vm383 = vcmp.lt.f32.partialorder %v382, 0.0004427343
    %v384 = vsel %vm383, %v381, %v378
    %v385 = vadd.f32 %v371, %v384
    %v386 = vlaneseq
    %v387 = vshrl.u32 %v386, 7
    %v388 = vsub.s32 0, %v387
    %v389 = vrot.slane %v370, %v388
    %v390 = vmul.f32 %v385, %v389
    %391 = vst [vmem:[#allocation10] sm:$0xff] %v390
    %392 = vst [vmem:[#allocation11] sm:$0xff] %v368
    // Predicated region
    $region42: #{st_net_softplus_forward.1} parent=1 // pred_check
      _
    $region43: #{st_net_softplus_forward.1} parent=1 // pred_check_branch
      %394 = sbr.rel (0) target = $region45
    $region44: #{st_net_softplus_forward.1} parent=1 // pred_region
      %s396 = ssub.s32 128, 128
      %397 = vsyncadd [#allocation4], %s396
      %s399 = sshll.u32 [#allocation10], 4
      %s400 = int_to_ptr.vmem [resolvable:$true] %s399
      %402 = dma.vmem_to_hbm [thread:$0]  %s400, 128, %s6, [#allocation4]
    $region45: #{st_net_softplus_forward.1} parent=1 // pred_fallthru
      _
    // Predicated region
    $region46: #{st_net_softplus_forward.1} parent=1 // pred_check
      _
    $region47: #{st_net_softplus_forward.1} parent=1 // pred_check_branch
      %404 = sbr.rel (0) target = $region49
    $region48: #{st_net_softplus_forward.1} parent=1 // pred_region
      %s406 = ssub.s32 128, 128
      %407 = vsyncadd [#allocation12], %s406
      %s409 = sshll.u32 [#allocation11], 4
      %s410 = int_to_ptr.vmem [resolvable:$true] %s409
      %412 = dma.vmem_to_hbm [thread:$0]  %s410, 128, %s7, [#allocation12]
    $region49: #{st_net_softplus_forward.1} parent=1 // pred_fallthru
      _
    // Predicated region
    $region50: #{st_net_softplus_forward.1} parent=1 // pred_check
      _
    $region51: #{st_net_softplus_forward.1} parent=1 // pred_check_branch
      %414 = sbr.rel (0) target = $region53
    $region52: #{st_net_softplus_forward.1} parent=1 // pred_region
      %415 = dma.done [#allocation4], 128
    $region53: #{st_net_softplus_forward.1} parent=1 // pred_fallthru
      _
    // Predicated region
    $region54: #{st_net_softplus_forward.1} parent=1 // pred_check
      _
    $region55: #{st_net_softplus_forward.1} parent=1 // pred_check_branch
      %417 = sbr.rel (0) target = $region57
    $region56: #{st_net_softplus_forward.1} parent=1 // pred_region
      %418 = dma.done [#allocation12], 128
    $region57: #{st_net_softplus_forward.1} parent=1 // pred_fallthru
      _
    %419 = vsyncpa [#allocation3], 1
    %420 = vsyncpa [#allocation6], 1
    %421 = vsyncpa [#allocation9], 1
    %422 = vsyncpa [#allocation4], 1
    %423 = vsyncpa [#allocation12], 1

</llo_original>
